<compile_context>
chip_gen: v5e
topology: v5e:2x2
jax: 0.10.0
libtpu: 0.0.40
codegen_flags: <defaults>
</compile_context>

<pallas_src>
import functools

import jax
import jax.numpy as jnp
from jax import lax
from jax.experimental import pallas as pl
from jax.experimental.pallas import tpu as pltpu


def _cru_kernel(x_ref, w_sq_ref, w_y_ref, bias_ref, mask_ref, o_ref, *,
                H, W, ksize, op_channel, tap_dtype):
    """One grid step == one block of Nb images, channels-first (C, H*W)."""
    Nb = x_ref.shape[0]
    C = op_channel
    HW = H * W
    half = ksize // 2
    cdt = x_ref.dtype                         # MXU operand dtype (f32 or bf16)

    w_sq = w_sq_ref[...]                      # (SQ, C)        cdt
    w_y = w_y_ref[...]                        # (2C, k*k*SQ)   cdt
    bias = bias_ref[...]                      # (2C, 1)        f32

    for b in range(Nb):                       # Nb is small & static: unrolled
        x = x_ref[b]                          # (C, HW) static index, free

        # -- Stage 1: squeeze1 + squeeze2 fused as ONE block-diag matmul. ----
        sq = jnp.dot(w_sq, x, preferred_element_type=jnp.float32)   # (SQ, HW)
        sq = sq.astype(tap_dtype)

        # -- Stage 2: im2col taps of the whole 8-sublane-aligned SQ slab. ----
        taps = []
        t = 0
        for ky in range(ksize):
            for kx in range(ksize):
                dy, dx = ky - half, kx - half
                shift = (-(dy * W + dx)) % HW    # flat-HW rotate == 2-D shift
                tap = sq if shift == 0 else pltpu.roll(sq, shift=shift, axis=1)
                if dy != 0 or dx != 0:           # zero wrapped border pixels
                    tap = tap * mask_ref[t:t + 1, :]
                taps.append(tap)
                t += 1
        patches = jnp.concatenate(taps, axis=0).astype(cdt)   # (k*k*SQ, HW)

        # -- Stage 3: fused [GWC+PWC1 ; PWC2 ; low passthrough] matmul. ------
        out = jnp.dot(w_y, patches,
                      preferred_element_type=jnp.float32) + bias   # (2C, HW)

        # -- Stage 4: channel attention on the tiny pooled (2C, 1) vector. ---
        avg = jnp.mean(out, axis=1, keepdims=True)              # (2C, 1)
        mx = jnp.max(avg, axis=0, keepdims=True)
        e = jnp.exp(avg - mx)
        s = e / jnp.sum(e, axis=0, keepdims=True)               # exact div

        res = out[:C, :] * s[:C, :] + out[C:, :] * s[C:, :]     # (C, HW)
        o_ref[b] = res.astype(o_ref.dtype)


def _pack_weights(w_sq1, w_sq2, w_gwc, b_gwc, w_pwc1, w_pwc2, *, op_channel,
                  group_size):
    """Host-side (free) packing into the two fused block-diagonal weights."""
    C = op_channel
    up_ch, sq_up = w_sq1.shape
    low_ch, sq_low = w_sq2.shape
    SQ = sq_up + sq_low
    kh, kw, gin, cout = w_gwc.shape
    assert cout == C and gin * group_size == sq_up
    cg = C // group_size
    KK = kh * kw
    center = (kh // 2) * kw + (kw // 2)

    # Stage-1 weight: blockdiag(squeeze1^T, squeeze2^T) of shape (SQ, C).
    w_sq = jnp.zeros((SQ, C), jnp.float32)
    w_sq = w_sq.at[:sq_up, :up_ch].set(w_sq1.T)
    w_sq = w_sq.at[sq_up:, up_ch:].set(w_sq2.T)

    # Stage-2 weight: (2C, KK, SQ) fused [GWC+PWC1 ; PWC2 ; low passthrough].
    w_y = jnp.zeros((2 * C, KK, SQ), jnp.float32)
    for g in range(group_size):                       # grouped kxk conv blocks
        blk = w_gwc[:, :, :, g * cg:(g + 1) * cg]             # (kh,kw,gin,cg)
        blk = jnp.transpose(blk, (3, 0, 1, 2)).reshape(cg, KK, gin)
        w_y = w_y.at[g * cg:(g + 1) * cg, :, g * gin:(g + 1) * gin].set(blk)
    # PWC1 (1x1) folded into the centre tap's up columns of the Y1 rows.
    w_y = w_y.at[:C, center, :sq_up].add(w_pwc1.T)
    # PWC2 (1x1) on the centre tap's low columns.
    w_y = w_y.at[C:2 * C - sq_low, center, sq_up:].set(w_pwc2.T)
    # low_s passthrough rows (identity on the centre tap's low columns).
    w_y = w_y.at[2 * C - sq_low:, center, sq_up:].set(
        jnp.eye(sq_low, dtype=jnp.float32))
    w_y = w_y.reshape(2 * C, KK * SQ)

    # Bias: GWC bias on the Y1 rows, zero on the Y2 rows.
    b_full = jnp.concatenate(
        [b_gwc.reshape(C, 1), jnp.zeros((C, 1), jnp.float32)], axis=0)
    return w_sq, w_y, b_full


def _border_masks(H, W, ksize):
    """Precomputed 'SAME'-padding border masks, (k*k, H*W), host-side."""
    cols = jnp.tile(jnp.arange(W, dtype=jnp.int32), H)
    rows = jnp.repeat(jnp.arange(H, dtype=jnp.int32), W)
    half = ksize // 2
    ms = []
    for ky in range(ksize):
        for kx in range(ksize):
            dy, dx = ky - half, kx - half
            valid = ((rows + dy >= 0) & (rows + dy <= H - 1) &
                     (cols + dx >= 0) & (cols + dx <= W - 1))
            ms.append(valid)
    return jnp.stack(ms, axis=0).astype(jnp.float32)


def _pick_batch_block(n, max_block):
    nb = max(1, min(n, max_block))
    while n % nb:
        nb -= 1
    return nb


def init_params(key, op_channel, alpha=0.5, squeeze_radio=2, group_size=2,
                group_kernel_size=3):
    up_ch = int(alpha * op_channel)
    low_ch = op_channel - up_ch
    sq_up = up_ch // squeeze_radio
    sq_low = low_ch // squeeze_radio
    gin = sq_up // group_size
    ks = jax.random.split(key, 6)

    def wn(k, shape, fan_in):
        return jax.random.normal(k, shape, jnp.float32) / jnp.sqrt(float(fan_in))

    w_sq1 = wn(ks[0], (up_ch, sq_up), up_ch)                      # (Cin, Cout)
    w_sq2 = wn(ks[1], (low_ch, sq_low), low_ch)
    w_gwc = wn(ks[2], (group_kernel_size, group_kernel_size, gin, op_channel),
               gin * group_kernel_size * group_kernel_size)       # HWIO
    b_gwc = 0.1 * jax.random.normal(ks[3], (1, op_channel), jnp.float32)
    w_pwc1 = wn(ks[4], (sq_up, op_channel), sq_up)
    w_pwc2 = wn(ks[5], (sq_low, op_channel - sq_low), sq_low)
    return (w_sq1, w_sq2, w_gwc, b_gwc, w_pwc1, w_pwc2)


def cru_forward(x_nchw, params, *, op_channel, alpha=0.5, squeeze_radio=2,
                group_size=2, compute_dtype=None, tap_dtype=None,
                batch_block=8):
    """compute_dtype: MXU operand dtype (bf16 is fast on v5e/v6e/v7x MXUs).
    tap_dtype: dtype for the roll/mask tap construction (default f32 —
    portable; pass bf16 on v6e/v7x for less XLU/VPU traffic)."""
    N, C, H, W = x_nchw.shape
    assert C == op_channel
    up_ch = int(alpha * op_channel)
    low_ch = C - up_ch
    assert up_ch % squeeze_radio == 0 and low_ch % squeeze_radio == 0
    sq_up = up_ch // squeeze_radio
    assert sq_up % group_size == 0 and C % group_size == 0

    w_sq1, w_sq2, w_gwc, b_gwc, w_pwc1, w_pwc2 = params
    ksize = w_gwc.shape[0]
    assert ksize % 2 == 1 and ksize // 2 < min(H, W)

    cdt = (jnp.dtype(compute_dtype) if compute_dtype is not None
           else jnp.dtype(x_nchw.dtype))
    tap_dt = (jnp.dtype(tap_dtype) if tap_dtype is not None
              else jnp.dtype(jnp.float32))

    # Host-side packing (free): fused block-diagonal weights + border masks.
    w_sq, w_y, b_full = _pack_weights(w_sq1, w_sq2, w_gwc, b_gwc, w_pwc1,
                                      w_pwc2, op_channel=C,
                                      group_size=group_size)
    w_sq_c = w_sq.astype(cdt)
    w_y_c = w_y.astype(cdt)
    mask = _border_masks(H, W, ksize).astype(tap_dt)          # (k*k, HW)

    HW = H * W
    x = x_nchw.reshape(N, C, HW).astype(cdt)   # contiguous reshape, no transpose

    Nb = _pick_batch_block(N, batch_block)     # batch-block the grid
    grid = (N // Nb,)

    kern = functools.partial(_cru_kernel, H=H, W=W, ksize=ksize,
                             op_channel=C, tap_dtype=tap_dt)

    def wspec(arr):
        nd = arr.ndim
        return pl.BlockSpec(arr.shape, lambda n, _nd=nd: (0,) * _nd)

    out = pl.pallas_call(
        kern,
        out_shape=jax.ShapeDtypeStruct((N, C, HW), cdt),
        grid=grid,
        in_specs=[
            pl.BlockSpec((Nb, C, HW), lambda n: (n, 0, 0)),
            wspec(w_sq_c), wspec(w_y_c), wspec(b_full), wspec(mask),
        ],
        out_specs=pl.BlockSpec((Nb, C, HW), lambda n: (n, 0, 0)),
        compiler_params=pltpu.CompilerParams(
            dimension_semantics=("parallel",)),
    )(x, w_sq_c, w_y_c, b_full, mask)

    return out.reshape(N, C, H, W)


def cru_reference(x_nchw, params, *, op_channel, alpha=0.5, group_size=2):
    """Pure-JAX reference (same math as the PyTorch module) for verification."""
    w_sq1, w_sq2, w_gwc, b_gwc, w_pwc1, w_pwc2 = params
    up_ch = int(alpha * op_channel)
    x = jnp.transpose(x_nchw, (0, 2, 3, 1)).astype(jnp.float32)
    up, low = x[..., :up_ch], x[..., up_ch:]
    up_s = jnp.einsum('nhwc,cd->nhwd', up, w_sq1)
    low_s = jnp.einsum('nhwc,cd->nhwd', low, w_sq2)
    gwc = lax.conv_general_dilated(
        up_s, w_gwc, window_strides=(1, 1), padding='SAME',
        dimension_numbers=('NHWC', 'HWIO', 'NHWC'),
        feature_group_count=group_size) + b_gwc.reshape(1, 1, 1, -1)
    y1 = gwc + jnp.einsum('nhwc,cd->nhwd', up_s, w_pwc1)
    y2 = jnp.concatenate([jnp.einsum('nhwc,cd->nhwd', low_s, w_pwc2), low_s],
                         axis=-1)
    out = jnp.concatenate([y1, y2], axis=-1)
    avg = jnp.mean(out, axis=(1, 2), keepdims=True)
    out = out * jax.nn.softmax(avg, axis=-1)
    res = out[..., :op_channel] + out[..., op_channel:]
    return jnp.transpose(res, (0, 3, 1, 2))


if __name__ == "__main__":
    key = jax.random.PRNGKey(0)
    kx, kp = jax.random.split(key)

    # op_channel chosen so (alpha*C)//squeeze_radio is divisible by group_size
    # (same constraint the PyTorch module has).  batch_block=2 keeps >= 2
    # grid steps at N=4 (v7x dual-TC) while still blocking 2 images per step.
    N, C, H, W = 4, 16, 16, 16
    x = jax.random.normal(kx, (N, C, H, W), jnp.float32)   # NCHW, as in PyTorch
    params = init_params(kp, C)

    ref = cru_reference(x, params, op_channel=C)

    # f32 path (verification path; exact softmax division).
    out = cru_forward(x, params, op_channel=C, batch_block=2)
    out = jax.block_until_ready(out)
    assert out.shape == (N, C, H, W)
    if not bool(jnp.allclose(out, ref, atol=5e-3, rtol=5e-3)):
        err = float(jnp.max(jnp.abs(out - ref)))
        raise AssertionError(f"f32 Pallas CRU mismatch (max abs err {err})")

    # bf16 MXU-operand path (fast path on all TPU generations; elementwise /
    # softmax math stays f32; tap construction kept f32 for v5e portability —
    # pass tap_dtype=jnp.bfloat16 on v6e/v7x).
    out_bf16 = cru_forward(x, params, op_channel=C,
                           compute_dtype=jnp.bfloat16, batch_block=2)
    out_bf16 = jax.block_until_ready(out_bf16).astype(jnp.float32)
    if not bool(jnp.allclose(out_bf16, ref, atol=6e-2, rtol=6e-2)):
        err = float(jnp.max(jnp.abs(out_bf16 - ref)))
        raise AssertionError(f"bf16 Pallas CRU mismatch (max abs err {err})")

    print("KERNEL_OK")
</pallas_src>

<mosaic_0001>
module attributes {stable_mosaic.version = 11 : i64} {
  func.func @_cru_kernel(%arg0: i32, %arg1: memref<2x16x256xf32, #tpu.memory_space<vmem>>, %arg2: memref<8x16xf32, #tpu.memory_space<vmem>>, %arg3: memref<32x72xf32, #tpu.memory_space<vmem>>, %arg4: memref<32x1xf32, #tpu.memory_space<vmem>>, %arg5: memref<9x256xf32, #tpu.memory_space<vmem>>, %arg6: memref<2x16x256xf32, #tpu.memory_space<vmem>>) attributes {dimension_semantics = [#tpu.dimension_semantics<parallel>], iteration_bounds = array<i64: 2>, scalar_prefetch = 0 : i64, scratch_operands = 0 : i64, tpu.core_type = #tpu.core_type<tc>, window_params = [{transform_indices = @transform_0, window_bounds = array<i64: 2, 16, 256>}, {pipeline_mode = #tpu.pipeline_mode<synchronous>, transform_indices = @transform_1, window_bounds = array<i64: 8, 16>}, {pipeline_mode = #tpu.pipeline_mode<synchronous>, transform_indices = @transform_2, window_bounds = array<i64: 32, 72>}, {pipeline_mode = #tpu.pipeline_mode<synchronous>, transform_indices = @transform_3, window_bounds = array<i64: 32, 1>}, {pipeline_mode = #tpu.pipeline_mode<synchronous>, transform_indices = @transform_4, window_bounds = array<i64: 9, 256>}, {transform_indices = @transform_5, window_bounds = array<i64: 2, 16, 256>}]} {
    %c0 = arith.constant 0 : index
    %c0_0 = arith.constant 0 : index
    %0 = vector.load %arg2[%c0, %c0_0] : memref<8x16xf32, #tpu.memory_space<vmem>>, vector<8x16xf32>
    %c0_1 = arith.constant 0 : index
    %c0_2 = arith.constant 0 : index
    %1 = vector.load %arg3[%c0_1, %c0_2] : memref<32x72xf32, #tpu.memory_space<vmem>>, vector<32x72xf32>
    %c0_3 = arith.constant 0 : index
    %c0_4 = arith.constant 0 : index
    %2 = vector.load %arg4[%c0_3, %c0_4] : memref<32x1xf32, #tpu.memory_space<vmem>>, vector<32x1xf32>
    %c0_5 = arith.constant 0 : index
    %c0_6 = arith.constant 0 : index
    %c0_7 = arith.constant 0 : index
    %3 = vector.load %arg1[%c0_5, %c0_6, %c0_7] : memref<2x16x256xf32, #tpu.memory_space<vmem>>, vector<1x16x256xf32>
    %4 = vector.shape_cast %3 : vector<1x16x256xf32> to vector<16x256xf32>
    %cst = arith.constant dense<0.000000e+00> : vector<8x256xf32>
    %5 = tpu.matmul %0, %4, %cst {dimension_numbers = #tpu.dot_dimension_numbers<[1], [0], [0], [1], [0, 0, 1, 1], [], []>} : vector<8x16xf32>, vector<16x256xf32>, vector<8x256xf32> -> vector<8x256xf32>
    %c17_i32 = arith.constant 17 : i32
    %6 = tpu.dynamic_rotate %5 by %c17_i32 dim 1 : vector<8x256xf32>, i32 -> vector<8x256xf32>
    %c0_8 = arith.constant 0 : index
    %c0_9 = arith.constant 0 : index
    %7 = vector.load %arg5[%c0_8, %c0_9] : memref<9x256xf32, #tpu.memory_space<vmem>>, vector<1x256xf32>
    %8 = vector.broadcast %7 : vector<1x256xf32> to vector<8x256xf32>
    %9 = arith.mulf %6, %8 : vector<8x256xf32>
    %c16_i32 = arith.constant 16 : i32
    %10 = tpu.dynamic_rotate %5 by %c16_i32 dim 1 : vector<8x256xf32>, i32 -> vector<8x256xf32>
    %c1 = arith.constant 1 : index
    %c0_10 = arith.constant 0 : index
    %11 = vector.load %arg5[%c1, %c0_10] : memref<9x256xf32, #tpu.memory_space<vmem>>, vector<1x256xf32>
    %12 = vector.broadcast %11 : vector<1x256xf32> to vector<8x256xf32>
    %13 = arith.mulf %10, %12 : vector<8x256xf32>
    %c15_i32 = arith.constant 15 : i32
    %14 = tpu.dynamic_rotate %5 by %c15_i32 dim 1 : vector<8x256xf32>, i32 -> vector<8x256xf32>
    %c2 = arith.constant 2 : index
    %c0_11 = arith.constant 0 : index
    %15 = vector.load %arg5[%c2, %c0_11] : memref<9x256xf32, #tpu.memory_space<vmem>>, vector<1x256xf32>
    %16 = vector.broadcast %15 : vector<1x256xf32> to vector<8x256xf32>
    %17 = arith.mulf %14, %16 : vector<8x256xf32>
    %c1_i32 = arith.constant 1 : i32
    %18 = tpu.dynamic_rotate %5 by %c1_i32 dim 1 : vector<8x256xf32>, i32 -> vector<8x256xf32>
    %c3 = arith.constant 3 : index
    %c0_12 = arith.constant 0 : index
    %19 = vector.load %arg5[%c3, %c0_12] : memref<9x256xf32, #tpu.memory_space<vmem>>, vector<1x256xf32>
    %20 = vector.broadcast %19 : vector<1x256xf32> to vector<8x256xf32>
    %21 = arith.mulf %18, %20 : vector<8x256xf32>
    %c255_i32 = arith.constant 255 : i32
    %22 = tpu.dynamic_rotate %5 by %c255_i32 dim 1 : vector<8x256xf32>, i32 -> vector<8x256xf32>
    %c5 = arith.constant 5 : index
    %c0_13 = arith.constant 0 : index
    %23 = vector.load %arg5[%c5, %c0_13] : memref<9x256xf32, #tpu.memory_space<vmem>>, vector<1x256xf32>
    %24 = vector.broadcast %23 : vector<1x256xf32> to vector<8x256xf32>
    %25 = arith.mulf %22, %24 : vector<8x256xf32>
    %c241_i32 = arith.constant 241 : i32
    %26 = tpu.dynamic_rotate %5 by %c241_i32 dim 1 : vector<8x256xf32>, i32 -> vector<8x256xf32>
    %c6 = arith.constant 6 : index
    %c0_14 = arith.constant 0 : index
    %27 = vector.load %arg5[%c6, %c0_14] : memref<9x256xf32, #tpu.memory_space<vmem>>, vector<1x256xf32>
    %28 = vector.broadcast %27 : vector<1x256xf32> to vector<8x256xf32>
    %29 = arith.mulf %26, %28 : vector<8x256xf32>
    %c240_i32 = arith.constant 240 : i32
    %30 = tpu.dynamic_rotate %5 by %c240_i32 dim 1 : vector<8x256xf32>, i32 -> vector<8x256xf32>
    %c7 = arith.constant 7 : index
    %c0_15 = arith.constant 0 : index
    %31 = vector.load %arg5[%c7, %c0_15] : memref<9x256xf32, #tpu.memory_space<vmem>>, vector<1x256xf32>
    %32 = vector.broadcast %31 : vector<1x256xf32> to vector<8x256xf32>
    %33 = arith.mulf %30, %32 : vector<8x256xf32>
    %c239_i32 = arith.constant 239 : i32
    %34 = tpu.dynamic_rotate %5 by %c239_i32 dim 1 : vector<8x256xf32>, i32 -> vector<8x256xf32>
    %c8 = arith.constant 8 : index
    %c0_16 = arith.constant 0 : index
    %35 = vector.load %arg5[%c8, %c0_16] : memref<9x256xf32, #tpu.memory_space<vmem>>, vector<1x256xf32>
    %36 = vector.broadcast %35 : vector<1x256xf32> to vector<8x256xf32>
    %37 = arith.mulf %34, %36 : vector<8x256xf32>
    %38 = tpu.concatenate %9, %13, %17, %21, %5, %25, %29, %33, %37 in 0 : vector<8x256xf32>, vector<8x256xf32>, vector<8x256xf32>, vector<8x256xf32>, vector<8x256xf32>, vector<8x256xf32>, vector<8x256xf32>, vector<8x256xf32>, vector<8x256xf32> -> vector<72x256xf32>
    %cst_17 = arith.constant dense<0.000000e+00> : vector<32x256xf32>
    %39 = tpu.matmul %1, %38, %cst_17 {dimension_numbers = #tpu.dot_dimension_numbers<[1], [0], [0], [1], [0, 0, 1, 1], [], []>} : vector<32x72xf32>, vector<72x256xf32>, vector<32x256xf32> -> vector<32x256xf32>
    %40 = vector.broadcast %2 : vector<32x1xf32> to vector<32x256xf32>
    %41 = arith.addf %39, %40 : vector<32x256xf32>
    %cst_18 = arith.constant dense<0.000000e+00> : vector<32xf32>
    %42 = vector.multi_reduction <add>, %41, %cst_18 [1] : vector<32x256xf32> to vector<32xf32>
    %43 = vector.shape_cast %42 : vector<32xf32> to vector<32x1xf32>
    %cst_19 = arith.constant 2.560000e+02 : f32
    %44 = vector.broadcast %cst_19 : f32 to vector<32x1xf32>
    %45 = arith.divf %43, %44 : vector<32x1xf32>
    %cst_20 = arith.constant dense<0xFF800000> : vector<1xf32>
    %46 = vector.multi_reduction <maximumf>, %45, %cst_20 [0] : vector<32x1xf32> to vector<1xf32>
    %47 = vector.shape_cast %46 : vector<1xf32> to vector<1x1xf32>
    %48 = vector.broadcast %47 : vector<1x1xf32> to vector<32x1xf32>
    %49 = arith.subf %45, %48 : vector<32x1xf32>
    %50 = math.exp %49 : vector<32x1xf32>
    %cst_21 = arith.constant dense<0.000000e+00> : vector<1xf32>
    %51 = vector.multi_reduction <add>, %50, %cst_21 [0] : vector<32x1xf32> to vector<1xf32>
    %52 = vector.shape_cast %51 : vector<1xf32> to vector<1x1xf32>
    %53 = vector.broadcast %52 : vector<1x1xf32> to vector<32x1xf32>
    %54 = arith.divf %50, %53 : vector<32x1xf32>
    %55 = vector.extract_strided_slice %41 {offsets = [0, 0], sizes = [16, 256], strides = [1, 1]} : vector<32x256xf32> to vector<16x256xf32>
    %56 = vector.extract_strided_slice %54 {offsets = [0, 0], sizes = [16, 1], strides = [1, 1]} : vector<32x1xf32> to vector<16x1xf32>
    %57 = vector.broadcast %56 : vector<16x1xf32> to vector<16x256xf32>
    %58 = arith.mulf %55, %57 : vector<16x256xf32>
    %59 = vector.extract_strided_slice %41 {offsets = [16, 0], sizes = [16, 256], strides = [1, 1]} : vector<32x256xf32> to vector<16x256xf32>
    %60 = vector.extract_strided_slice %54 {offsets = [16, 0], sizes = [16, 1], strides = [1, 1]} : vector<32x1xf32> to vector<16x1xf32>
    %61 = vector.broadcast %60 : vector<16x1xf32> to vector<16x256xf32>
    %62 = arith.mulf %59, %61 : vector<16x256xf32>
    %63 = arith.addf %58, %62 : vector<16x256xf32>
    %c0_22 = arith.constant 0 : index
    %c0_23 = arith.constant 0 : index
    %c0_24 = arith.constant 0 : index
    %64 = vector.load %arg6[%c0_22, %c0_23, %c0_24] : memref<2x16x256xf32, #tpu.memory_space<vmem>>, vector<1x16x256xf32>
    %65 = vector.shape_cast %64 : vector<1x16x256xf32> to vector<16x256xf32>
    %66 = vector.shape_cast %63 : vector<16x256xf32> to vector<1x16x256xf32>
    tpu.vector_store %arg6[%c0_22, %c0_23, %c0_24], %66 {strides = array<i32>} : memref<2x16x256xf32, #tpu.memory_space<vmem>>, vector<1x16x256xf32>,
    %c1_25 = arith.constant 1 : index
    %c0_26 = arith.constant 0 : index
    %c0_27 = arith.constant 0 : index
    %67 = vector.load %arg1[%c1_25, %c0_26, %c0_27] : memref<2x16x256xf32, #tpu.memory_space<vmem>>, vector<1x16x256xf32>
    %68 = vector.shape_cast %67 : vector<1x16x256xf32> to vector<16x256xf32>
    %cst_28 = arith.constant dense<0.000000e+00> : vector<8x256xf32>
    %69 = tpu.matmul %0, %68, %cst_28 {dimension_numbers = #tpu.dot_dimension_numbers<[1], [0], [0], [1], [0, 0, 1, 1], [], []>} : vector<8x16xf32>, vector<16x256xf32>, vector<8x256xf32> -> vector<8x256xf32>
    %c17_i32_29 = arith.constant 17 : i32
    %70 = tpu.dynamic_rotate %69 by %c17_i32_29 dim 1 : vector<8x256xf32>, i32 -> vector<8x256xf32>
    %c0_30 = arith.constant 0 : index
    %c0_31 = arith.constant 0 : index
    %71 = vector.load %arg5[%c0_30, %c0_31] : memref<9x256xf32, #tpu.memory_space<vmem>>, vector<1x256xf32>
    %72 = vector.broadcast %71 : vector<1x256xf32> to vector<8x256xf32>
    %73 = arith.mulf %70, %72 : vector<8x256xf32>
    %c16_i32_32 = arith.constant 16 : i32
    %74 = tpu.dynamic_rotate %69 by %c16_i32_32 dim 1 : vector<8x256xf32>, i32 -> vector<8x256xf32>
    %c1_33 = arith.constant 1 : index
    %c0_34 = arith.constant 0 : index
    %75 = vector.load %arg5[%c1_33, %c0_34] : memref<9x256xf32, #tpu.memory_space<vmem>>, vector<1x256xf32>
    %76 = vector.broadcast %75 : vector<1x256xf32> to vector<8x256xf32>
    %77 = arith.mulf %74, %76 : vector<8x256xf32>
    %c15_i32_35 = arith.constant 15 : i32
    %78 = tpu.dynamic_rotate %69 by %c15_i32_35 dim 1 : vector<8x256xf32>, i32 -> vector<8x256xf32>
    %c2_36 = arith.constant 2 : index
    %c0_37 = arith.constant 0 : index
    %79 = vector.load %arg5[%c2_36, %c0_37] : memref<9x256xf32, #tpu.memory_space<vmem>>, vector<1x256xf32>
    %80 = vector.broadcast %79 : vector<1x256xf32> to vector<8x256xf32>
    %81 = arith.mulf %78, %80 : vector<8x256xf32>
    %c1_i32_38 = arith.constant 1 : i32
    %82 = tpu.dynamic_rotate %69 by %c1_i32_38 dim 1 : vector<8x256xf32>, i32 -> vector<8x256xf32>
    %c3_39 = arith.constant 3 : index
    %c0_40 = arith.constant 0 : index
    %83 = vector.load %arg5[%c3_39, %c0_40] : memref<9x256xf32, #tpu.memory_space<vmem>>, vector<1x256xf32>
    %84 = vector.broadcast %83 : vector<1x256xf32> to vector<8x256xf32>
    %85 = arith.mulf %82, %84 : vector<8x256xf32>
    %c255_i32_41 = arith.constant 255 : i32
    %86 = tpu.dynamic_rotate %69 by %c255_i32_41 dim 1 : vector<8x256xf32>, i32 -> vector<8x256xf32>
    %c5_42 = arith.constant 5 : index
    %c0_43 = arith.constant 0 : index
    %87 = vector.load %arg5[%c5_42, %c0_43] : memref<9x256xf32, #tpu.memory_space<vmem>>, vector<1x256xf32>
    %88 = vector.broadcast %87 : vector<1x256xf32> to vector<8x256xf32>
    %89 = arith.mulf %86, %88 : vector<8x256xf32>
    %c241_i32_44 = arith.constant 241 : i32
    %90 = tpu.dynamic_rotate %69 by %c241_i32_44 dim 1 : vector<8x256xf32>, i32 -> vector<8x256xf32>
    %c6_45 = arith.constant 6 : index
    %c0_46 = arith.constant 0 : index
    %91 = vector.load %arg5[%c6_45, %c0_46] : memref<9x256xf32, #tpu.memory_space<vmem>>, vector<1x256xf32>
    %92 = vector.broadcast %91 : vector<1x256xf32> to vector<8x256xf32>
    %93 = arith.mulf %90, %92 : vector<8x256xf32>
    %c240_i32_47 = arith.constant 240 : i32
    %94 = tpu.dynamic_rotate %69 by %c240_i32_47 dim 1 : vector<8x256xf32>, i32 -> vector<8x256xf32>
    %c7_48 = arith.constant 7 : index
    %c0_49 = arith.constant 0 : index
    %95 = vector.load %arg5[%c7_48, %c0_49] : memref<9x256xf32, #tpu.memory_space<vmem>>, vector<1x256xf32>
    %96 = vector.broadcast %95 : vector<1x256xf32> to vector<8x256xf32>
    %97 = arith.mulf %94, %96 : vector<8x256xf32>
    %c239_i32_50 = arith.constant 239 : i32
    %98 = tpu.dynamic_rotate %69 by %c239_i32_50 dim 1 : vector<8x256xf32>, i32 -> vector<8x256xf32>
    %c8_51 = arith.constant 8 : index
    %c0_52 = arith.constant 0 : index
    %99 = vector.load %arg5[%c8_51, %c0_52] : memref<9x256xf32, #tpu.memory_space<vmem>>, vector<1x256xf32>
    %100 = vector.broadcast %99 : vector<1x256xf32> to vector<8x256xf32>
    %101 = arith.mulf %98, %100 : vector<8x256xf32>
    %102 = tpu.concatenate %73, %77, %81, %85, %69, %89, %93, %97, %101 in 0 : vector<8x256xf32>, vector<8x256xf32>, vector<8x256xf32>, vector<8x256xf32>, vector<8x256xf32>, vector<8x256xf32>, vector<8x256xf32>, vector<8x256xf32>, vector<8x256xf32> -> vector<72x256xf32>
    %cst_53 = arith.constant dense<0.000000e+00> : vector<32x256xf32>
    %103 = tpu.matmul %1, %102, %cst_53 {dimension_numbers = #tpu.dot_dimension_numbers<[1], [0], [0], [1], [0, 0, 1, 1], [], []>} : vector<32x72xf32>, vector<72x256xf32>, vector<32x256xf32> -> vector<32x256xf32>
    %104 = vector.broadcast %2 : vector<32x1xf32> to vector<32x256xf32>
    %105 = arith.addf %103, %104 : vector<32x256xf32>
    %cst_54 = arith.constant dense<0.000000e+00> : vector<32xf32>
    %106 = vector.multi_reduction <add>, %105, %cst_54 [1] : vector<32x256xf32> to vector<32xf32>
    %107 = vector.shape_cast %106 : vector<32xf32> to vector<32x1xf32>
    %cst_55 = arith.constant 2.560000e+02 : f32
    %108 = vector.broadcast %cst_55 : f32 to vector<32x1xf32>
    %109 = arith.divf %107, %108 : vector<32x1xf32>
    %cst_56 = arith.constant dense<0xFF800000> : vector<1xf32>
    %110 = vector.multi_reduction <maximumf>, %109, %cst_56 [0] : vector<32x1xf32> to vector<1xf32>
    %111 = vector.shape_cast %110 : vector<1xf32> to vector<1x1xf32>
    %112 = vector.broadcast %111 : vector<1x1xf32> to vector<32x1xf32>
    %113 = arith.subf %109, %112 : vector<32x1xf32>
    %114 = math.exp %113 : vector<32x1xf32>
    %cst_57 = arith.constant dense<0.000000e+00> : vector<1xf32>
    %115 = vector.multi_reduction <add>, %114, %cst_57 [0] : vector<32x1xf32> to vector<1xf32>
    %116 = vector.shape_cast %115 : vector<1xf32> to vector<1x1xf32>
    %117 = vector.broadcast %116 : vector<1x1xf32> to vector<32x1xf32>
    %118 = arith.divf %114, %117 : vector<32x1xf32>
    %119 = vector.extract_strided_slice %105 {offsets = [0, 0], sizes = [16, 256], strides = [1, 1]} : vector<32x256xf32> to vector<16x256xf32>
    %120 = vector.extract_strided_slice %118 {offsets = [0, 0], sizes = [16, 1], strides = [1, 1]} : vector<32x1xf32> to vector<16x1xf32>
    %121 = vector.broadcast %120 : vector<16x1xf32> to vector<16x256xf32>
    %122 = arith.mulf %119, %121 : vector<16x256xf32>
    %123 = vector.extract_strided_slice %105 {offsets = [16, 0], sizes = [16, 256], strides = [1, 1]} : vector<32x256xf32> to vector<16x256xf32>
    %124 = vector.extract_strided_slice %118 {offsets = [16, 0], sizes = [16, 1], strides = [1, 1]} : vector<32x1xf32> to vector<16x1xf32>
    %125 = vector.broadcast %124 : vector<16x1xf32> to vector<16x256xf32>
    %126 = arith.mulf %123, %125 : vector<16x256xf32>
    %127 = arith.addf %122, %126 : vector<16x256xf32>
    %c1_58 = arith.constant 1 : index
    %c0_59 = arith.constant 0 : index
    %c0_60 = arith.constant 0 : index
    %128 = vector.load %arg6[%c1_58, %c0_59, %c0_60] : memref<2x16x256xf32, #tpu.memory_space<vmem>>, vector<1x16x256xf32>
    %129 = vector.shape_cast %128 : vector<1x16x256xf32> to vector<16x256xf32>
    %130 = vector.shape_cast %127 : vector<16x256xf32> to vector<1x16x256xf32>
    tpu.vector_store %arg6[%c1_58, %c0_59, %c0_60], %130 {strides = array<i32>} : memref<2x16x256xf32, #tpu.memory_space<vmem>>, vector<1x16x256xf32>,
    return
  }
  func.func @transform_0(%arg0: i32) -> (i32, i32, i32) {
    %c0_i32 = arith.constant 0 : i32
    %c0_i32_0 = arith.constant 0 : i32
    %c0_i32_1 = arith.constant 0 : i32
    return %arg0, %c0_i32, %c0_i32_0 : i32, i32, i32
  }
  func.func @transform_1(%arg0: i32) -> (i32, i32) {
    %c0_i32 = arith.constant 0 : i32
    %c0_i32_0 = arith.constant 0 : i32
    %c0_i32_1 = arith.constant 0 : i32
    return %c0_i32, %c0_i32_0 : i32, i32
  }
  func.func @transform_2(%arg0: i32) -> (i32, i32) {
    %c0_i32 = arith.constant 0 : i32
    %c0_i32_0 = arith.constant 0 : i32
    %c0_i32_1 = arith.constant 0 : i32
    return %c0_i32, %c0_i32_0 : i32, i32
  }
  func.func @transform_3(%arg0: i32) -> (i32, i32) {
    %c0_i32 = arith.constant 0 : i32
    %c0_i32_0 = arith.constant 0 : i32
    %c0_i32_1 = arith.constant 0 : i32
    return %c0_i32, %c0_i32_0 : i32, i32
  }
  func.func @transform_4(%arg0: i32) -> (i32, i32) {
    %c0_i32 = arith.constant 0 : i32
    %c0_i32_0 = arith.constant 0 : i32
    %c0_i32_1 = arith.constant 0 : i32
    return %c0_i32, %c0_i32_0 : i32, i32
  }
  func.func @transform_5(%arg0: i32) -> (i32, i32, i32) {
    %c0_i32 = arith.constant 0 : i32
    %c0_i32_0 = arith.constant 0 : i32
    %c0_i32_1 = arith.constant 0 : i32
    return %arg0, %c0_i32, %c0_i32_0 : i32, i32, i32
  }
}

</mosaic_0001>

<llo_original>
// kernel: tpu_custom_call.1
$region0: #{tpu_custom_call.1}
  #allocation0 [shape = 'u32[]', space=smem, size = 0x4, offset = 0x4, fixed_abs, tag = 'smem constant byte address 0x4 - core index']
  #allocation1 [shape = 'u32[72,128]{1,0:T(1,128)}', space=vmem, size = 0x9000, scoped, tag = 'internal scratch']
  %s0 = inlined_call_operand.hbm [shape: f32[4,16,256], index: 0, kind: input, shape index: {}]
  %s1 = inlined_call_operand.hbm [shape: f32[8,16], index: 1, kind: input, shape index: {}]
  %s2 = inlined_call_operand.vmem [shape: f32[32,72], index: 2, kind: input, shape index: {}]
  %s3 = inlined_call_operand.vmem [shape: f32[32,1], index: 3, kind: input, shape index: {}]
  %s4 = inlined_call_operand.hbm [shape: f32[9,256], index: 4, kind: input, shape index: {}]
  %s5 = inlined_call_operand.hbm [shape: f32[4,16,256], index: 5, kind: output, shape index: {}]
  %s6 = sld [smem:[#allocation0]]
  $region65: #{tpu_custom_call.1} parent=0
    _
  %s8 = ssub.s32 1, %s6
  %s9 = scalar_select 0, %s8, %s6
  $region1: #{tpu_custom_call.1} parent=0
    #allocation2 [shape = 'u8[65536]{0}', space=vmem, size = 0x10000, scoped, tag = 'input window, operand 0']
    #allocation3 [shape = 's32[2]{0}', space=sflag, size = 0x8, scoped, tag = 'scoped memory for tpu_custom_call.1']
    #allocation4 [shape = 's32[2]{0}', space=sflag, size = 0x8, scoped, tag = 'scoped memory for tpu_custom_call.1']
    #allocation5 [shape = 'u8[4096]{0}', space=vmem, size = 0x1000, scoped, tag = 'input window, operand 1, single buffered']
    #allocation6 [shape = 's32[1]{0}', space=sflag, size = 0x4, scoped, tag = 'scoped memory for tpu_custom_call.1']
    #allocation7 [shape = 'u8[16384]{0}', space=vmem, size = 0x4000, scoped, tag = 'input window, operand 4, single buffered']
    #allocation8 [shape = 'u8[65536]{0}', space=vmem, size = 0x10000, scoped, tag = 'output window, operand 0']
    %10 = vsyncpa [#allocation3], 0
    %s11 = scalar_lea.sflag [#allocation3], 1
    %12 = vsyncpa %s11, 0
    %13 = vsyncpa [#allocation6], 0
    %14 = vsyncpa [#allocation4], 0
    %s15 = scalar_lea.sflag [#allocation4], 1
    %16 = vsyncpa %s15, 0
    loop: start=0, step=1, limit=4
    $region2: #{tpu_custom_call.1} parent=1 // loop_pre_header
      _
    $region3: #{tpu_custom_call.1} parent=1 // loop_header
      %s18 = sphi 0, %s22
      %p19 = scmp.ge.s32.totalorder %s18, 4
      %s28 = sphi 0, %s30
      %s31 = sphi 0, %s28
      %s32 = sphi 0, %s31
      %s48 = sphi 0, %s32
      %s52 = sphi 0, %s52
      %s54 = sphi 0, %s52
      %s55 = sphi 0, %s54
      %s69 = sphi 0, %s55
      %s73 = sphi 0, %s73
      %s75 = sphi 0, %s73
      %s76 = sphi 0, %s75
      %s90 = sphi 0, %s76
      %s94 = sphi 0, %s94
      %s96 = sphi 0, %s94
      %s97 = sphi 0, %s96
      %s111 = sphi 0, %s97
      %s115 = sphi 0, %s115
      %s117 = sphi 0, %s115
      %s118 = sphi 0, %s117
      %s132 = sphi 0, %s118
      %s138 = sphi 0, %s140
      %s141 = sphi 0, %s138
      %s142 = sphi 0, %s141
      %s158 = sphi 0, %s142
    $region4: #{tpu_custom_call.1} parent=1 // loop_header_branch
      %21 = sbr.rel (%p19) target = $region8
    $region5: #{tpu_custom_call.1} parent=1 // loop_body
      %s23 = ssub.s32 %s18, 1
      %s24 = ssub.s32 %s18, 2
      %s25 = sadd.s32 %s18, 1
      %s26 = ssub.s32 %s18, %s25
      %p27 = scmp.eq.s32.totalorder %s26, 0
      %s29 = sadd.s32 %s28, 1
      %s30 = scalar_select %p27, %s28, %s29
      %p33 = pneg %p27
      %p34 = scmp.eq.s32.totalorder %s18, 1
      %p35 = por %p33, %p34
      %p36 = scmp.ne.s32.totalorder %s28, %s31
      %p37 = scmp.eq.s32.totalorder %s18, 0
      %p38 = por %p36, %p37
      %p39 = scmp.ne.s32.totalorder %s28, %s31
      %p40 = scmp.eq.s32.totalorder %s23, 1
      %p41 = por %p39, %p40
      %p42 = scmp.ne.s32.totalorder %s31, %s32
      %p43 = scmp.eq.s32.totalorder %s23, 0
      %p44 = por %p42, %p43
      %p45 = scmp.ne.s32.totalorder %s31, %s32
      %p46 = scmp.eq.s32.totalorder %s24, 1
      %p47 = por %p45, %p46
      %p49 = scmp.ne.s32.totalorder %s32, %s48
      %p50 = scmp.eq.s32.totalorder %s24, 0
      %p51 = por %p49, %p50
      %s53 = sadd.s32 %s52, 1
      %p56 = scmp.eq.s32.totalorder %s18, 1
      %p57 = scmp.ne.s32.totalorder %s52, %s54
      %p58 = scmp.eq.s32.totalorder %s18, 0
      %p59 = por %p57, %p58
      %p60 = scmp.ne.s32.totalorder %s52, %s54
      %p61 = scmp.eq.s32.totalorder %s23, 1
      %p62 = por %p60, %p61
      %p63 = scmp.ne.s32.totalorder %s54, %s55
      %p64 = scmp.eq.s32.totalorder %s23, 0
      %p65 = por %p63, %p64
      %p66 = scmp.ne.s32.totalorder %s54, %s55
      %p67 = scmp.eq.s32.totalorder %s24, 1
      %p68 = por %p66, %p67
      %p70 = scmp.ne.s32.totalorder %s55, %s69
      %p71 = scmp.eq.s32.totalorder %s24, 0
      %p72 = por %p70, %p71
      %s74 = sadd.s32 %s73, 1
      %p77 = scmp.eq.s32.totalorder %s18, 1
      %p78 = scmp.ne.s32.totalorder %s73, %s75
      %p79 = scmp.eq.s32.totalorder %s18, 0
      %p80 = por %p78, %p79
      %p81 = scmp.ne.s32.totalorder %s73, %s75
      %p82 = scmp.eq.s32.totalorder %s23, 1
      %p83 = por %p81, %p82
      %p84 = scmp.ne.s32.totalorder %s75, %s76
      %p85 = scmp.eq.s32.totalorder %s23, 0
      %p86 = por %p84, %p85
      %p87 = scmp.ne.s32.totalorder %s75, %s76
      %p88 = scmp.eq.s32.totalorder %s24, 1
      %p89 = por %p87, %p88
      %p91 = scmp.ne.s32.totalorder %s76, %s90
      %p92 = scmp.eq.s32.totalorder %s24, 0
      %p93 = por %p91, %p92
      %s95 = sadd.s32 %s94, 1
      %p98 = scmp.eq.s32.totalorder %s18, 1
      %p99 = scmp.ne.s32.totalorder %s94, %s96
      %p100 = scmp.eq.s32.totalorder %s18, 0
      %p101 = por %p99, %p100
      %p102 = scmp.ne.s32.totalorder %s94, %s96
      %p103 = scmp.eq.s32.totalorder %s23, 1
      %p104 = por %p102, %p103
      %p105 = scmp.ne.s32.totalorder %s96, %s97
      %p106 = scmp.eq.s32.totalorder %s23, 0
      %p107 = por %p105, %p106
      %p108 = scmp.ne.s32.totalorder %s96, %s97
      %p109 = scmp.eq.s32.totalorder %s24, 1
      %p110 = por %p108, %p109
      %p112 = scmp.ne.s32.totalorder %s97, %s111
      %p113 = scmp.eq.s32.totalorder %s24, 0
      %p114 = por %p112, %p113
      %s116 = sadd.s32 %s115, 1
      %p119 = scmp.eq.s32.totalorder %s18, 1
      %p120 = scmp.ne.s32.totalorder %s115, %s117
      %p121 = scmp.eq.s32.totalorder %s18, 0
      %p122 = por %p120, %p121
      %p123 = scmp.ne.s32.totalorder %s115, %s117
      %p124 = scmp.eq.s32.totalorder %s23, 1
      %p125 = por %p123, %p124
      %p126 = scmp.ne.s32.totalorder %s117, %s118
      %p127 = scmp.eq.s32.totalorder %s23, 0
      %p128 = por %p126, %p127
      %p129 = scmp.ne.s32.totalorder %s117, %s118
      %p130 = scmp.eq.s32.totalorder %s24, 1
      %p131 = por %p129, %p130
      %p133 = scmp.ne.s32.totalorder %s118, %s132
      %p134 = scmp.eq.s32.totalorder %s24, 0
      %p135 = por %p133, %p134
      %s136 = ssub.s32 %s18, %s25
      %p137 = scmp.eq.s32.totalorder %s136, 0
      %s139 = sadd.s32 %s138, 1
      %s140 = scalar_select %p137, %s138, %s139
      %p143 = pneg %p137
      %p144 = scmp.eq.s32.totalorder %s18, 1
      %p145 = por %p143, %p144
      %p146 = scmp.ne.s32.totalorder %s138, %s141
      %p147 = scmp.eq.s32.totalorder %s18, 0
      %p148 = por %p146, %p147
      %p149 = scmp.ne.s32.totalorder %s138, %s141
      %p150 = scmp.eq.s32.totalorder %s23, 1
      %p151 = por %p149, %p150
      %p152 = scmp.ne.s32.totalorder %s141, %s142
      %p153 = scmp.eq.s32.totalorder %s23, 0
      %p154 = por %p152, %p153
      %p155 = scmp.ne.s32.totalorder %s141, %s142
      %p156 = scmp.eq.s32.totalorder %s24, 1
      %p157 = por %p155, %p156
      %p159 = scmp.ne.s32.totalorder %s142, %s158
      %p160 = scmp.eq.s32.totalorder %s24, 0
      %p161 = por %p159, %p160
      %p162 = scmp.le.s32.totalorder 1, %s18
      %p163 = scmp.lt.s32.totalorder %s18, 3
      %p164 = pnand %p162, %p163
      %p165 = pneg %p164
      // Predicated region
      $region9: #{tpu_custom_call.1} parent=5 // pred_check
        _
      $region10: #{tpu_custom_call.1} parent=5 // pred_check_branch
        %167 = sbr.rel (%p164) target = $region12
      $region11: #{tpu_custom_call.1} parent=5 // pred_region
        %s168 = ssub.s32 %s18, 1
        // Predicated region
        $region13: #{tpu_custom_call.1} parent=11 // pred_check
          %p169 = pneg %p65
        $region14: #{tpu_custom_call.1} parent=11 // pred_check_branch
          %171 = sbr.rel (%p169) target = $region16
        $region15: #{tpu_custom_call.1} parent=11 // pred_region
          %173 = vsyncadd [#allocation6], 0
          %s175 = sshll.u32 %s1, 4
          %s176 = int_to_ptr.hbm [resolvable:$true] %s175
          %s177 = sshll.u32 [#allocation5], 4
          %s178 = int_to_ptr.vmem [resolvable:$true] %s177
          %180 = dma.hbm_to_vmem [thread:$0]  %s176, 128, %s178, [#allocation6]
        $region16: #{tpu_custom_call.1} parent=11 // pred_fallthru
          _
        // Predicated region
        $region17: #{tpu_custom_call.1} parent=11 // pred_check
          %p181 = pneg %p86
        $region18: #{tpu_custom_call.1} parent=11 // pred_check_branch
          %183 = sbr.rel (%p181) target = $region20
        $region19: #{tpu_custom_call.1} parent=11 // pred_region
          _
        $region20: #{tpu_custom_call.1} parent=11 // pred_fallthru
          _
        // Predicated region
        $region21: #{tpu_custom_call.1} parent=11 // pred_check
          %p184 = pneg %p107
        $region22: #{tpu_custom_call.1} parent=11 // pred_check_branch
          %186 = sbr.rel (%p184) target = $region24
        $region23: #{tpu_custom_call.1} parent=11 // pred_region
          _
        $region24: #{tpu_custom_call.1} parent=11 // pred_fallthru
          _
        // Predicated region
        $region25: #{tpu_custom_call.1} parent=11 // pred_check
          %p187 = pneg %p128
        $region26: #{tpu_custom_call.1} parent=11 // pred_check_branch
          %189 = sbr.rel (%p187) target = $region28
        $region27: #{tpu_custom_call.1} parent=11 // pred_region
          %191 = vsyncadd [#allocation6], 0
          %s192 = sshll.u32 %s4, 4
          %s193 = int_to_ptr.hbm [resolvable:$true] %s192
          %s194 = sshll.u32 [#allocation7], 4
          %s195 = int_to_ptr.vmem [resolvable:$true] %s194
          %200 = dma.hbm_to_vmem [thread:$0]  %s193, 512, %s195, [#allocation6], 256, 256, 16
        $region28: #{tpu_custom_call.1} parent=11 // pred_fallthru
          _
      $region12: #{tpu_custom_call.1} parent=5 // pred_fallthru
        _
      %p201 = scmp.lt.s32.totalorder %s18, 2
      // Predicated region
      $region29: #{tpu_custom_call.1} parent=5 // pred_check
        %p202 = pneg %p201
      $region30: #{tpu_custom_call.1} parent=5 // pred_check_branch
        %204 = sbr.rel (%p202) target = $region32
      $region31: #{tpu_custom_call.1} parent=5 // pred_region
        // Predicated region
        $region33: #{tpu_custom_call.1} parent=31 // pred_check
          %p205 = pneg %p38
        $region34: #{tpu_custom_call.1} parent=31 // pred_check_branch
          %207 = sbr.rel (%p205) target = $region36
        $region35: #{tpu_custom_call.1} parent=31 // pred_region
          %s208 = sand.u32 %s28, 1
          %s209 = scalar_lea.sflag [#allocation3], %s208
          %s210 = sand.u32 %s28, 1
          %s211 = smul.addr %s210, 64
          %s212 = scalar_lea.vmem [#allocation2], %s211
          %s213 = smul.u32 2, %s18
          %215 = vsyncadd %s209, 0
          %s216 = smul.addr %s213, 4
          %s217 = smul.addr %s216, 8
          %s218 = scalar_lea.hbm %s0, %s217
          %s219 = sshll.u32 %s218, 4
          %s220 = int_to_ptr.hbm [resolvable:$true] %s219
          %s221 = sshll.u32 %s212, 4
          %s222 = int_to_ptr.vmem [resolvable:$true] %s221
          %227 = dma.hbm_to_vmem [thread:$0]  %s220, 1024, %s222, %s209, 256, 256, 16
        $region36: #{tpu_custom_call.1} parent=31 // pred_fallthru
          _
      $region32: #{tpu_custom_call.1} parent=5 // pred_fallthru
        _
      %p228 = scmp.le.s32.totalorder 1, %s18
      %p229 = scmp.lt.s32.totalorder %s18, 3
      %p230 = pnand %p228, %p229
      %p231 = pneg %p230
      // Predicated region
      $region37: #{tpu_custom_call.1} parent=5 // pred_check
        _
      $region38: #{tpu_custom_call.1} parent=5 // pred_check_branch
        %233 = sbr.rel (%p230) target = $region40
      $region39: #{tpu_custom_call.1} parent=5 // pred_region
        %s234 = ssub.s32 %s18, 1
        %s235 = sand.u32 %s31, 1
        %s236 = scalar_lea.sflag [#allocation3], %s235
        %s237 = sand.u32 %s31, 1
        %s238 = smul.addr %s237, 64
        %s239 = scalar_lea.vmem [#allocation2], %s238
        // Predicated region
        $region41: #{tpu_custom_call.1} parent=39 // pred_check
          %p240 = pneg %p44
        $region42: #{tpu_custom_call.1} parent=39 // pred_check_branch
          %242 = sbr.rel (%p240) target = $region44
        $region43: #{tpu_custom_call.1} parent=39 // pred_region
          %244 = dma.done %s236, 1024
        $region44: #{tpu_custom_call.1} parent=39 // pred_fallthru
          _
        // Predicated region
        $region45: #{tpu_custom_call.1} parent=39 // pred_check
          %p245 = pneg %p65
        $region46: #{tpu_custom_call.1} parent=39 // pred_check_branch
          %247 = sbr.rel (%p245) target = $region48
        $region47: #{tpu_custom_call.1} parent=39 // pred_region
          %249 = dma.done [#allocation6], 128
        $region48: #{tpu_custom_call.1} parent=39 // pred_fallthru
          _
        // Predicated region
        $region49: #{tpu_custom_call.1} parent=39 // pred_check
          %p250 = pneg %p128
        $region50: #{tpu_custom_call.1} parent=39 // pred_check_branch
          %252 = sbr.rel (%p250) target = $region52
        $region51: #{tpu_custom_call.1} parent=39 // pred_region
          %254 = dma.done [#allocation6], 512
        $region52: #{tpu_custom_call.1} parent=39 // pred_fallthru
          _
        %s255 = sand.u32 %s31, 1
        %s256 = scalar_lea.sflag [#allocation3], %s255
        %s257 = sand.u32 %s31, 1
        %s258 = smul.addr %s257, 64
        %s259 = scalar_lea.vmem [#allocation2], %s258
        %p260 = pneg %p44
        %p261 = pneg %p41
        %p262 = pneg %p65
        %p263 = pneg %p62
        %p264 = pneg %p86
        %p265 = pneg %p83
        %p266 = pneg %p107
        %p267 = pneg %p104
        %p268 = pneg %p128
        %p269 = pneg %p125
        %p270 = pneg %p154
        %p271 = pneg %p151
        %s272 = sand.u32 %s141, 1
        %s273 = scalar_lea.sflag [#allocation4], %s272
        %s274 = sand.u32 %s141, 1
        %s275 = smul.addr %s274, 64
        %s276 = scalar_lea.vmem [#allocation8], %s275
        %s277 = smul.u32 2, %s23
        %s278 = smul.u32 2, %s23
        %v279 = vld [vmem:[#allocation5] sm:$0xff]
        %v280 = vld [vmem:[%s2] sm:$0xff]
        %v281 = vld [vmem:[%s2 + $0x8] sm:$0xff]
        %v282 = vld [vmem:[%s2 + $0x10] sm:$0xff]
        %v283 = vld [vmem:[%s2 + $0x18] sm:$0xff]
        %v284 = vld [vmem:[%s3] sm:$0xff]
        %v285 = vld [vmem:[%s3 + $0x8] sm:$0xff]
        %v286 = vld [vmem:[%s3 + $0x10] sm:$0xff]
        %v287 = vld [vmem:[%s3 + $0x18] sm:$0xff]
        %v288 = vld [vmem:[%s239] sm:$0xff]
        %v289 = vld [vmem:[%s239 + $0x8] sm:$0xff]
        %v290 = vld [vmem:[%s239 + $0x10] sm:$0xff]
        %v291 = vld [vmem:[%s239 + $0x18] sm:$0xff]
        %vm292 = vcmask 130048
        %v294 = vsel %vm292, %v279, 0
        %296 = vmatpush.msra.mxu0 0.0
        %297 = vmatpush.msra.mxu0 0.0
        %298 = vmatpush.msra.mxu0 0.0
        %299 = vmatpush.msra.mxu0 0.0
        %300 = vmatpush.msra.mxu0 0.0
        %301 = vmatpush.msra.mxu0 0.0
        %302 = vmatpush.msra.mxu0 0.0
        %303 = vmatpush.msra.mxu0 0.0
        %304 = vmatpush.msra.mxu0 0.0
        %305 = vmatpush.msra.mxu0 0.0
        %306 = vmatpush.msra.mxu0 0.0
        %307 = vmatpush.msra.mxu0 0.0
        %308 = vmatpush.msra.mxu0 0.0
        %309 = vmatpush.msra.mxu0 0.0
        %310 = vmatpush.msra.mxu0 %v290
        %311 = vmatpush.msra.mxu0 %v288
        %312 = vmatmul.f32.gmra.mxu0 %v294
        %v313 = vpop.f32.mrf.mxu0
        %v314 = vadd.f32 0.0, %v313
        %315 = vdwg.mxu0
        %316 = vmatpush.msra.mxu0 0.0
        %317 = vmatpush.msra.mxu0 0.0
        %318 = vmatpush.msra.mxu0 0.0
        %319 = vmatpush.msra.mxu0 0.0
        %320 = vmatpush.msra.mxu0 0.0
        %321 = vmatpush.msra.mxu0 0.0
        %322 = vmatpush.msra.mxu0 0.0
        %323 = vmatpush.msra.mxu0 0.0
        %324 = vmatpush.msra.mxu0 0.0
        %325 = vmatpush.msra.mxu0 0.0
        %326 = vmatpush.msra.mxu0 0.0
        %327 = vmatpush.msra.mxu0 0.0
        %328 = vmatpush.msra.mxu0 0.0
        %329 = vmatpush.msra.mxu0 0.0
        %330 = vmatpush.msra.mxu0 %v291
        %331 = vmatpush.msra.mxu0 %v289
        %332 = vmatmul.f32.gmra.mxu0 %v294
        %v333 = vpop.f32.mrf.mxu0
        %v334 = vadd.f32 0.0, %v333
        %335 = vdwg.mxu0
        %336 = vrot.lane.b32.xlu0 %v314, 17
        %v337 = vpop.permute.xlu0 %336
        %338 = vrot.lane.b32.xlu0 %v334, 17
        %v339 = vpop.permute.xlu0 %338
        %v340 = vlaneseq
        %v341 = vand.u32 %v340, 127
        %vm342 = vcmp.lt.s32.totalorder %v341, 17
        %v343 = vsel %vm342, %v337, %v339
        %v344 = vsel %vm342, %v339, %v337
        %v345 = vld [vmem:[#allocation7] ss:$8 sm:$0x3]
        %v347 = vperm.slane %v345, 0
        %v348 = vperm.slane %v345, 1
        %v351 = vmul.f32 %v344, %v347
        %v352 = vmul.f32 %v343, %v348
        %353 = vrot.lane.b32.xlu0 %v314, 16
        %v354 = vpop.permute.xlu0 %353
        %355 = vrot.lane.b32.xlu0 %v334, 16
        %v356 = vpop.permute.xlu0 %355
        %vm357 = vcmp.lt.s32.totalorder %v341, 16
        %v358 = vsel %vm357, %v354, %v356
        %v359 = vsel %vm357, %v356, %v354
        %s360 = scalar_lea.vmem [#allocation7], 1
        %v361 = vld [vmem:[%s360] ss:$8 sm:$0x3]
        %v363 = vperm.slane %v361, 0
        %v364 = vperm.slane %v361, 1
        %v367 = vmul.f32 %v359, %v363
        %v368 = vmul.f32 %v358, %v364
        %369 = vrot.lane.b32.xlu0 %v314, 15
        %v370 = vpop.permute.xlu0 %369
        %371 = vrot.lane.b32.xlu0 %v334, 15
        %v372 = vpop.permute.xlu0 %371
        %vm373 = vcmp.lt.s32.totalorder %v341, 15
        %v374 = vsel %vm373, %v370, %v372
        %v375 = vsel %vm373, %v372, %v370
        %s376 = scalar_lea.vmem [#allocation7], 2
        %v377 = vld [vmem:[%s376] ss:$8 sm:$0x3]
        %v379 = vperm.slane %v377, 0
        %v380 = vperm.slane %v377, 1
        %v383 = vmul.f32 %v375, %v379
        %v384 = vmul.f32 %v374, %v380
        %385 = vrot.lane.b32.xlu0 %v314, 1
        %v386 = vpop.permute.xlu0 %385
        %387 = vrot.lane.b32.xlu0 %v334, 1
        %v388 = vpop.permute.xlu0 %387
        %vm389 = vcmp.lt.s32.totalorder %v341, 1
        %v390 = vsel %vm389, %v386, %v388
        %v391 = vsel %vm389, %v388, %v386
        %s392 = scalar_lea.vmem [#allocation7], 3
        %v393 = vld [vmem:[%s392] ss:$8 sm:$0x3]
        %v395 = vperm.slane %v393, 0
        %v396 = vperm.slane %v393, 1
        %v399 = vmul.f32 %v391, %v395
        %v400 = vmul.f32 %v390, %v396
        %401 = vrot.lane.b32.xlu0 %v314, 127
        %v402 = vpop.permute.xlu0 %401
        %403 = vrot.lane.b32.xlu0 %v334, 127
        %v404 = vpop.permute.xlu0 %403
        %vm405 = vcmp.lt.s32.totalorder %v341, 127
        %v406 = vsel %vm405, %v402, %v404
        %v407 = vsel %vm405, %v404, %v402
        %s408 = scalar_lea.vmem [#allocation7], 5
        %v409 = vld [vmem:[%s408] ss:$8 sm:$0x3]
        %v411 = vperm.slane %v409, 0
        %v412 = vperm.slane %v409, 1
        %v415 = vmul.f32 %v406, %v411
        %v416 = vmul.f32 %v407, %v412
        %417 = vrot.lane.b32.xlu0 %v314, 113
        %v418 = vpop.permute.xlu0 %417
        %419 = vrot.lane.b32.xlu0 %v334, 113
        %v420 = vpop.permute.xlu0 %419
        %vm421 = vcmp.lt.s32.totalorder %v341, 113
        %v422 = vsel %vm421, %v418, %v420
        %v423 = vsel %vm421, %v420, %v418
        %s424 = scalar_lea.vmem [#allocation7], 6
        %v425 = vld [vmem:[%s424] ss:$8 sm:$0x3]
        %v427 = vperm.slane %v425, 0
        %v428 = vperm.slane %v425, 1
        %v431 = vmul.f32 %v422, %v427
        %v432 = vmul.f32 %v423, %v428
        %433 = vrot.lane.b32.xlu0 %v314, 112
        %v434 = vpop.permute.xlu0 %433
        %435 = vrot.lane.b32.xlu0 %v334, 112
        %v436 = vpop.permute.xlu0 %435
        %vm437 = vcmp.lt.s32.totalorder %v341, 112
        %v438 = vsel %vm437, %v434, %v436
        %v439 = vsel %vm437, %v436, %v434
        %s440 = scalar_lea.vmem [#allocation7], 7
        %v441 = vld [vmem:[%s440] ss:$8 sm:$0x3]
        %v443 = vperm.slane %v441, 0
        %v444 = vperm.slane %v441, 1
        %v447 = vmul.f32 %v438, %v443
        %v448 = vmul.f32 %v439, %v444
        %449 = vrot.lane.b32.xlu0 %v314, 111
        %v450 = vpop.permute.xlu0 %449
        %451 = vrot.lane.b32.xlu0 %v334, 111
        %v452 = vpop.permute.xlu0 %451
        %vm453 = vcmp.lt.s32.totalorder %v341, 111
        %v454 = vsel %vm453, %v450, %v452
        %v455 = vsel %vm453, %v452, %v450
        %s456 = scalar_lea.vmem [#allocation7], 16
        %v457 = vld [vmem:[%s456] ss:$8 sm:$0x3]
        %v459 = vperm.slane %v457, 0
        %v460 = vperm.slane %v457, 1
        %v463 = vmul.f32 %v454, %v459
        %v464 = vmul.f32 %v455, %v460
        %466 = vset.pattern.permute.xlu0 0
        %467 = vperm.xlu0 %466, %v284
        %v468 = vpop.permute.xlu0 %467
        %471 = vset.pattern.permute.xlu0 0
        %472 = vperm.xlu0 %471, %v285
        %v473 = vpop.permute.xlu0 %472
        %476 = vset.pattern.permute.xlu0 0
        %477 = vperm.xlu0 %476, %v286
        %v478 = vpop.permute.xlu0 %477
        %481 = vset.pattern.permute.xlu0 0
        %482 = vperm.xlu0 %481, %v287
        %v483 = vpop.permute.xlu0 %482
        %vm485 = vcmask 588800
        %v487 = vsel %vm485, %v280, 0
        %v490 = vsel %vm485, %v281, 0
        %v493 = vsel %vm485, %v282, 0
        %v496 = vsel %vm485, %v283, 0
        %498 = vmatpush.msra.mxu0 0.0
        %499 = vmatpush.msra.mxu0 0.0
        %500 = vmatpush.msra.mxu0 0.0
        %501 = vmatpush.msra.mxu0 0.0
        %502 = vmatpush.msra.mxu0 0.0
        %503 = vmatpush.msra.mxu0 0.0
        %504 = vmatpush.msra.mxu0 0.0
        %505 = vmatpush.msra.mxu0 %v463
        %506 = vmatpush.msra.mxu0 %v447
        %507 = vmatpush.msra.mxu0 %v431
        %508 = vmatpush.msra.mxu0 %v415
        %509 = vmatpush.msra.mxu0 %v314
        %510 = vmatpush.msra.mxu0 %v399
        %511 = vmatpush.msra.mxu0 %v383
        %512 = vmatpush.msra.mxu0 %v367
        %513 = vmatpush.msra.mxu0 %v351
        %514 = vmatmul.f32.gmra.mxu0 %v487
        %v515 = vpop.f32.mrf.mxu0
        %v516 = vadd.f32 %v468, %v515
        %517 = vmatmul.f32.gmra.mxu0 %v490
        %v518 = vpop.f32.mrf.mxu0
        %v519 = vadd.f32 %v473, %v518
        %520 = vmatmul.f32.gmra.mxu0 %v493
        %v521 = vpop.f32.mrf.mxu0
        %v522 = vadd.f32 %v478, %v521
        %523 = vmatmul.f32.gmra.mxu0 %v496
        %v524 = vpop.f32.mrf.mxu0
        %v525 = vadd.f32 %v483, %v524
        %526 = vdwg.mxu0
        %527 = vmatpush.msra.mxu0 0.0
        %528 = vmatpush.msra.mxu0 0.0
        %529 = vmatpush.msra.mxu0 0.0
        %530 = vmatpush.msra.mxu0 0.0
        %531 = vmatpush.msra.mxu0 0.0
        %532 = vmatpush.msra.mxu0 0.0
        %533 = vmatpush.msra.mxu0 0.0
        %534 = vmatpush.msra.mxu0 %v464
        %535 = vmatpush.msra.mxu0 %v448
        %536 = vmatpush.msra.mxu0 %v432
        %537 = vmatpush.msra.mxu0 %v416
        %538 = vmatpush.msra.mxu0 %v334
        %539 = vmatpush.msra.mxu0 %v400
        %540 = vmatpush.msra.mxu0 %v384
        %541 = vmatpush.msra.mxu0 %v368
        %542 = vmatpush.msra.mxu0 %v352
        %543 = vmatmul.f32.gmra.mxu0 %v487
        %v544 = vpop.f32.mrf.mxu0
        %v545 = vadd.f32 %v468, %v544
        %546 = vmatmul.f32.gmra.mxu0 %v490
        %v547 = vpop.f32.mrf.mxu0
        %v548 = vadd.f32 %v473, %v547
        %549 = vmatmul.f32.gmra.mxu0 %v493
        %v550 = vpop.f32.mrf.mxu0
        %v551 = vadd.f32 %v478, %v550
        %552 = vmatmul.f32.gmra.mxu0 %v496
        %v553 = vpop.f32.mrf.mxu0
        %v554 = vadd.f32 %v483, %v553
        %555 = vdwg.mxu0
        %v556 = vadd.f32 %v516, %v545
        %557 = vadd.xlane.f32.xlu0 %v556
        %v558 = vpop.xlane.xlu0 %557
        %v559 = vadd.f32 %v519, %v548
        %560 = vadd.xlane.f32.xlu0 %v559
        %v561 = vpop.xlane.xlu0 %560
        %v562 = vadd.f32 %v522, %v551
        %563 = vadd.xlane.f32.xlu0 %v562
        %v564 = vpop.xlane.xlu0 %563
        %v565 = vadd.f32 %v525, %v554
        %566 = vadd.xlane.f32.xlu0 %v565
        %v567 = vpop.xlane.xlu0 %566
        %v568 = vrcp.pop 256.0
        %v569 = vmul.f32 256.0, %v568
        %v570 = vsub.f32 1.0, %v569
        %v571 = vmul.f32 %v568, %v570
        %v572 = vadd.f32 %v568, %v571
        %vm573 = vweird.f32 %v568
        %v574 = vsel %vm573, %v568, %v572
        %v575 = vmul.f32 %v558, %v574
        %v576 = vmul.f32 %v561, %v574
        %v577 = vmul.f32 %v564, %v574
        %v578 = vmul.f32 %v567, %v574
        %v579 = vmax.f32 %v575, %v576
        %v580 = vmax.f32 %v577, %v578
        %v581 = vmax.f32 %v579, %v580
        %v582 = vrot.slane %v581, 4
        %v583 = vmax.f32 %v581, %v582
        %v584 = vrot.slane %v583, 2
        %v585 = vmax.f32 %v583, %v584
        %v586 = vrot.slane %v585, 1
        %v587 = vmax.f32 %v585, %v586
        %v588 = vsub.f32 %v575, %v587
        %v589 = vsub.f32 %v576, %v587
        %v590 = vsub.f32 %v577, %v587
        %v591 = vsub.f32 %v578, %v587
        %v592 = vmul.f32 %v588, 1.442695
        %v593 = vpow.pop %v592
        %v594 = vmul.f32 %v589, 1.442695
        %v595 = vpow.pop %v594
        %v596 = vmul.f32 %v590, 1.442695
        %v597 = vpow.pop %v596
        %v598 = vmul.f32 %v591, 1.442695
        %v599 = vpow.pop %v598
        %v600 = vadd.f32 %v593, %v595
        %v601 = vadd.f32 %v600, %v597
        %v602 = vadd.f32 %v601, %v599
        %v603 = vrot.slane %v602, 4
        %v604 = vadd.f32 %v602, %v603
        %v605 = vrot.slane %v604, 2
        %v606 = vadd.f32 %v604, %v605
        %v607 = vrot.slane %v606, 1
        %v608 = vadd.f32 %v606, %v607
        %v609 = vrcp.pop %v608
        %v610 = vmul.f32 %v608, %v609
        %v611 = vsub.f32 1.0, %v610
        %v612 = vmul.f32 %v609, %v611
        %v613 = vadd.f32 %v609, %v612
        %vm614 = vweird.f32 %v608
        %vm615 = vweird.f32 %v609
        %vm616 = vmor %vm614, %vm615
        %v617 = vsel %vm616, %v609, %v613
        %v618 = vand.u32 2147483647, %v608
        %vm619 = vcmp.eq.f32.partialorder %v618, 8.507059e+37
        %v620 = vand.u32 %v608, 2147483648
        %v621 = vor.u32 1.1754944e-38, %v620
        %v622 = vsel %vm619, %v621, %v617
        %v623 = vmul.f32 %v593, %v622
        %v624 = vmul.f32 %v595, %v622
        %v625 = vmul.f32 %v597, %v622
        %v626 = vmul.f32 %v599, %v622
        %v627 = vmul.f32 %v516, %v623
        %v628 = vmul.f32 %v545, %v623
        %v629 = vmul.f32 %v519, %v624
        %v630 = vmul.f32 %v548, %v624
        %v631 = vmul.f32 %v522, %v625
        %v632 = vmul.f32 %v551, %v625
        %v633 = vmul.f32 %v525, %v626
        %v634 = vmul.f32 %v554, %v626
        %v635 = vadd.f32 %v627, %v631
        %v636 = vadd.f32 %v628, %v632
        %v637 = vadd.f32 %v629, %v633
        %v638 = vadd.f32 %v630, %v634
        %639 = vst [vmem:[%s276] sm:$0xff] %v635
        %640 = vst [vmem:[%s276 + $0x8] sm:$0xff] %v636
        %641 = vst [vmem:[%s276 + $0x10] sm:$0xff] %v637
        %642 = vst [vmem:[%s276 + $0x18] sm:$0xff] %v638
        %s643 = scalar_lea.vmem %s239, 32 [#allocation2]
        %v644 = vld [vmem:[%s643] sm:$0xff]
        %v645 = vld [vmem:[%s643 + $0x8] sm:$0xff]
        %v646 = vld [vmem:[%s643 + $0x10] sm:$0xff]
        %v647 = vld [vmem:[%s643 + $0x18] sm:$0xff]
        %648 = vmatpush.msra.mxu0 0.0
        %649 = vmatpush.msra.mxu0 0.0
        %650 = vmatpush.msra.mxu0 0.0
        %651 = vmatpush.msra.mxu0 0.0
        %652 = vmatpush.msra.mxu0 0.0
        %653 = vmatpush.msra.mxu0 0.0
        %654 = vmatpush.msra.mxu0 0.0
        %655 = vmatpush.msra.mxu0 0.0
        %656 = vmatpush.msra.mxu0 0.0
        %657 = vmatpush.msra.mxu0 0.0
        %658 = vmatpush.msra.mxu0 0.0
        %659 = vmatpush.msra.mxu0 0.0
        %660 = vmatpush.msra.mxu0 0.0
        %661 = vmatpush.msra.mxu0 0.0
        %662 = vmatpush.msra.mxu0 %v646
        %663 = vmatpush.msra.mxu0 %v644
        %664 = vmatmul.f32.gmra.mxu0 %v294
        %v665 = vpop.f32.mrf.mxu0
        %v666 = vadd.f32 0.0, %v665
        %667 = vdwg.mxu0
        %668 = vmatpush.msra.mxu0 0.0
        %669 = vmatpush.msra.mxu0 0.0
        %670 = vmatpush.msra.mxu0 0.0
        %671 = vmatpush.msra.mxu0 0.0
        %672 = vmatpush.msra.mxu0 0.0
        %673 = vmatpush.msra.mxu0 0.0
        %674 = vmatpush.msra.mxu0 0.0
        %675 = vmatpush.msra.mxu0 0.0
        %676 = vmatpush.msra.mxu0 0.0
        %677 = vmatpush.msra.mxu0 0.0
        %678 = vmatpush.msra.mxu0 0.0
        %679 = vmatpush.msra.mxu0 0.0
        %680 = vmatpush.msra.mxu0 0.0
        %681 = vmatpush.msra.mxu0 0.0
        %682 = vmatpush.msra.mxu0 %v647
        %683 = vmatpush.msra.mxu0 %v645
        %684 = vmatmul.f32.gmra.mxu0 %v294
        %v685 = vpop.f32.mrf.mxu0
        %v686 = vadd.f32 0.0, %v685
        %687 = vdwg.mxu0
        %688 = vrot.lane.b32.xlu0 %v666, 17
        %v689 = vpop.permute.xlu0 %688
        %690 = vrot.lane.b32.xlu0 %v686, 17
        %v691 = vpop.permute.xlu0 %690
        %v692 = vsel %vm342, %v689, %v691
        %v693 = vsel %vm342, %v691, %v689
        %v694 = vld [vmem:[#allocation7] ss:$8 sm:$0x3]
        %v696 = vperm.slane %v694, 0
        %v697 = vperm.slane %v694, 1
        %v700 = vmul.f32 %v693, %v696
        %v701 = vmul.f32 %v692, %v697
        %702 = vrot.lane.b32.xlu0 %v666, 16
        %v703 = vpop.permute.xlu0 %702
        %704 = vrot.lane.b32.xlu0 %v686, 16
        %v705 = vpop.permute.xlu0 %704
        %v706 = vsel %vm357, %v703, %v705
        %v707 = vsel %vm357, %v705, %v703
        %v708 = vld [vmem:[%s360] ss:$8 sm:$0x3]
        %v710 = vperm.slane %v708, 0
        %v711 = vperm.slane %v708, 1
        %v714 = vmul.f32 %v707, %v710
        %v715 = vmul.f32 %v706, %v711
        %716 = vrot.lane.b32.xlu0 %v666, 15
        %v717 = vpop.permute.xlu0 %716
        %718 = vrot.lane.b32.xlu0 %v686, 15
        %v719 = vpop.permute.xlu0 %718
        %v720 = vsel %vm373, %v717, %v719
        %v721 = vsel %vm373, %v719, %v717
        %v722 = vld [vmem:[%s376] ss:$8 sm:$0x3]
        %v724 = vperm.slane %v722, 0
        %v725 = vperm.slane %v722, 1
        %v728 = vmul.f32 %v721, %v724
        %v729 = vmul.f32 %v720, %v725
        %730 = vrot.lane.b32.xlu0 %v666, 1
        %v731 = vpop.permute.xlu0 %730
        %732 = vrot.lane.b32.xlu0 %v686, 1
        %v733 = vpop.permute.xlu0 %732
        %v734 = vsel %vm389, %v731, %v733
        %v735 = vsel %vm389, %v733, %v731
        %v736 = vld [vmem:[%s392] ss:$8 sm:$0x3]
        %v738 = vperm.slane %v736, 0
        %v739 = vperm.slane %v736, 1
        %v742 = vmul.f32 %v735, %v738
        %v743 = vmul.f32 %v734, %v739
        %744 = vrot.lane.b32.xlu0 %v666, 127
        %v745 = vpop.permute.xlu0 %744
        %746 = vrot.lane.b32.xlu0 %v686, 127
        %v747 = vpop.permute.xlu0 %746
        %v748 = vsel %vm405, %v745, %v747
        %v749 = vsel %vm405, %v747, %v745
        %v750 = vld [vmem:[%s408] ss:$8 sm:$0x3]
        %v752 = vperm.slane %v750, 0
        %v753 = vperm.slane %v750, 1
        %v756 = vmul.f32 %v748, %v752
        %v757 = vmul.f32 %v749, %v753
        %758 = vrot.lane.b32.xlu0 %v666, 113
        %v759 = vpop.permute.xlu0 %758
        %760 = vrot.lane.b32.xlu0 %v686, 113
        %v761 = vpop.permute.xlu0 %760
        %v762 = vsel %vm421, %v759, %v761
        %v763 = vsel %vm421, %v761, %v759
        %v764 = vld [vmem:[%s424] ss:$8 sm:$0x3]
        %v766 = vperm.slane %v764, 0
        %v767 = vperm.slane %v764, 1
        %v770 = vmul.f32 %v762, %v766
        %v771 = vmul.f32 %v763, %v767
        %772 = vrot.lane.b32.xlu0 %v666, 112
        %v773 = vpop.permute.xlu0 %772
        %774 = vrot.lane.b32.xlu0 %v686, 112
        %v775 = vpop.permute.xlu0 %774
        %v776 = vsel %vm437, %v773, %v775
        %v777 = vsel %vm437, %v775, %v773
        %v778 = vld [vmem:[%s440] ss:$8 sm:$0x3]
        %v780 = vperm.slane %v778, 0
        %v781 = vperm.slane %v778, 1
        %v784 = vmul.f32 %v776, %v780
        %v785 = vmul.f32 %v777, %v781
        %786 = vrot.lane.b32.xlu0 %v666, 111
        %v787 = vpop.permute.xlu0 %786
        %788 = vrot.lane.b32.xlu0 %v686, 111
        %v789 = vpop.permute.xlu0 %788
        %v790 = vsel %vm453, %v787, %v789
        %v791 = vsel %vm453, %v789, %v787
        %v792 = vld [vmem:[%s456] ss:$8 sm:$0x3]
        %v794 = vperm.slane %v792, 0
        %v795 = vperm.slane %v792, 1
        %v798 = vmul.f32 %v790, %v794
        %v799 = vmul.f32 %v791, %v795
        %800 = vmatpush.msra.mxu0 0.0
        %801 = vmatpush.msra.mxu0 0.0
        %802 = vmatpush.msra.mxu0 0.0
        %803 = vmatpush.msra.mxu0 0.0
        %804 = vmatpush.msra.mxu0 0.0
        %805 = vmatpush.msra.mxu0 0.0
        %806 = vmatpush.msra.mxu0 0.0
        %807 = vmatpush.msra.mxu0 %v798
        %808 = vmatpush.msra.mxu0 %v784
        %809 = vmatpush.msra.mxu0 %v770
        %810 = vmatpush.msra.mxu0 %v756
        %811 = vmatpush.msra.mxu0 %v666
        %812 = vmatpush.msra.mxu0 %v742
        %813 = vmatpush.msra.mxu0 %v728
        %814 = vmatpush.msra.mxu0 %v714
        %815 = vmatpush.msra.mxu0 %v700
        %816 = vmatmul.f32.gmra.mxu0 %v487
        %v817 = vpop.f32.mrf.mxu0
        %v818 = vadd.f32 %v468, %v817
        %819 = vmatmul.f32.gmra.mxu0 %v490
        %v820 = vpop.f32.mrf.mxu0
        %v821 = vadd.f32 %v473, %v820
        %822 = vmatmul.f32.gmra.mxu0 %v493
        %v823 = vpop.f32.mrf.mxu0
        %v824 = vadd.f32 %v478, %v823
        %825 = vmatmul.f32.gmra.mxu0 %v496
        %v826 = vpop.f32.mrf.mxu0
        %v827 = vadd.f32 %v483, %v826
        %828 = vdwg.mxu0
        %829 = vmatpush.msra.mxu0 0.0
        %830 = vmatpush.msra.mxu0 0.0
        %831 = vmatpush.msra.mxu0 0.0
        %832 = vmatpush.msra.mxu0 0.0
        %833 = vmatpush.msra.mxu0 0.0
        %834 = vmatpush.msra.mxu0 0.0
        %835 = vmatpush.msra.mxu0 0.0
        %836 = vmatpush.msra.mxu0 %v799
        %837 = vmatpush.msra.mxu0 %v785
        %838 = vmatpush.msra.mxu0 %v771
        %839 = vmatpush.msra.mxu0 %v757
        %840 = vmatpush.msra.mxu0 %v686
        %841 = vmatpush.msra.mxu0 %v743
        %842 = vmatpush.msra.mxu0 %v729
        %843 = vmatpush.msra.mxu0 %v715
        %844 = vmatpush.msra.mxu0 %v701
        %845 = vmatmul.f32.gmra.mxu0 %v487
        %v846 = vpop.f32.mrf.mxu0
        %v847 = vadd.f32 %v468, %v846
        %848 = vmatmul.f32.gmra.mxu0 %v490
        %v849 = vpop.f32.mrf.mxu0
        %v850 = vadd.f32 %v473, %v849
        %851 = vmatmul.f32.gmra.mxu0 %v493
        %v852 = vpop.f32.mrf.mxu0
        %v853 = vadd.f32 %v478, %v852
        %854 = vmatmul.f32.gmra.mxu0 %v496
        %v855 = vpop.f32.mrf.mxu0
        %v856 = vadd.f32 %v483, %v855
        %857 = vdwg.mxu0
        %v858 = vadd.f32 %v818, %v847
        %859 = vadd.xlane.f32.xlu0 %v858
        %v860 = vpop.xlane.xlu0 %859
        %v861 = vadd.f32 %v821, %v850
        %862 = vadd.xlane.f32.xlu0 %v861
        %v863 = vpop.xlane.xlu0 %862
        %v864 = vadd.f32 %v824, %v853
        %865 = vadd.xlane.f32.xlu0 %v864
        %v866 = vpop.xlane.xlu0 %865
        %v867 = vadd.f32 %v827, %v856
        %868 = vadd.xlane.f32.xlu0 %v867
        %v869 = vpop.xlane.xlu0 %868
        %v870 = vmul.f32 %v860, %v574
        %v871 = vmul.f32 %v863, %v574
        %v872 = vmul.f32 %v866, %v574
        %v873 = vmul.f32 %v869, %v574
        %v874 = vmax.f32 %v870, %v871
        %v875 = vmax.f32 %v872, %v873
        %v876 = vmax.f32 %v874, %v875
        %v877 = vrot.slane %v876, 4
        %v878 = vmax.f32 %v876, %v877
        %v879 = vrot.slane %v878, 2
        %v880 = vmax.f32 %v878, %v879
        %v881 = vrot.slane %v880, 1
        %v882 = vmax.f32 %v880, %v881
        %v883 = vsub.f32 %v870, %v882
        %v884 = vsub.f32 %v871, %v882
        %v885 = vsub.f32 %v872, %v882
        %v886 = vsub.f32 %v873, %v882
        %v887 = vmul.f32 %v883, 1.442695
        %v888 = vpow.pop %v887
        %v889 = vmul.f32 %v884, 1.442695
        %v890 = vpow.pop %v889
        %v891 = vmul.f32 %v885, 1.442695
        %v892 = vpow.pop %v891
        %v893 = vmul.f32 %v886, 1.442695
        %v894 = vpow.pop %v893
        %v895 = vadd.f32 %v888, %v890
        %v896 = vadd.f32 %v895, %v892
        %v897 = vadd.f32 %v896, %v894
        %v898 = vrot.slane %v897, 4
        %v899 = vadd.f32 %v897, %v898
        %v900 = vrot.slane %v899, 2
        %v901 = vadd.f32 %v899, %v900
        %v902 = vrot.slane %v901, 1
        %v903 = vadd.f32 %v901, %v902
        %v904 = vrcp.pop %v903
        %v905 = vmul.f32 %v903, %v904
        %v906 = vsub.f32 1.0, %v905
        %v907 = vmul.f32 %v904, %v906
        %v908 = vadd.f32 %v904, %v907
        %vm909 = vweird.f32 %v903
        %vm910 = vweird.f32 %v904
        %vm911 = vmor %vm909, %vm910
        %v912 = vsel %vm911, %v904, %v908
        %v913 = vand.u32 2147483647, %v903
        %vm914 = vcmp.eq.f32.partialorder %v913, 8.507059e+37
        %v915 = vand.u32 %v903, 2147483648
        %v916 = vor.u32 1.1754944e-38, %v915
        %v917 = vsel %vm914, %v916, %v912
        %v918 = vmul.f32 %v888, %v917
        %v919 = vmul.f32 %v890, %v917
        %v920 = vmul.f32 %v892, %v917
        %v921 = vmul.f32 %v894, %v917
        %v922 = vmul.f32 %v818, %v918
        %v923 = vmul.f32 %v847, %v918
        %v924 = vmul.f32 %v821, %v919
        %v925 = vmul.f32 %v850, %v919
        %v926 = vmul.f32 %v824, %v920
        %v927 = vmul.f32 %v853, %v920
        %v928 = vmul.f32 %v827, %v921
        %v929 = vmul.f32 %v856, %v921
        %v930 = vadd.f32 %v922, %v926
        %v931 = vadd.f32 %v923, %v927
        %v932 = vadd.f32 %v924, %v928
        %v933 = vadd.f32 %v925, %v929
        %s934 = scalar_lea.vmem %s276, 32 [#allocation8]
        %935 = vst [vmem:[%s934] sm:$0xff] %v930
        %936 = vst [vmem:[%s934 + $0x8] sm:$0xff] %v931
        %937 = vst [vmem:[%s934 + $0x10] sm:$0xff] %v932
        %938 = vst [vmem:[%s934 + $0x18] sm:$0xff] %v933
        %s939 = sand.u32 %s141, 1
        %s940 = scalar_lea.sflag [#allocation4], %s939
        %s941 = sand.u32 %s141, 1
        %s942 = smul.addr %s941, 64
        %s943 = scalar_lea.vmem [#allocation8], %s942
        // Predicated region
        $region53: #{tpu_custom_call.1} parent=39 // pred_check
          %p944 = pneg %p151
        $region54: #{tpu_custom_call.1} parent=39 // pred_check_branch
          %946 = sbr.rel (%p944) target = $region56
        $region55: #{tpu_custom_call.1} parent=39 // pred_region
          %s947 = smul.u32 2, %s23
          %949 = vsyncadd %s940, 0
          %s950 = smul.addr %s947, 4
          %s951 = smul.addr %s950, 8
          %s952 = scalar_lea.hbm %s5, %s951
          %s953 = sshll.u32 %s943, 4
          %s954 = int_to_ptr.vmem [resolvable:$true] %s953
          %s955 = sshll.u32 %s952, 4
          %s956 = int_to_ptr.hbm [resolvable:$true] %s955
          %961 = dma.vmem_to_hbm [thread:$0]  %s954, 1024, %s956, %s940, 256, 256, 16
        $region56: #{tpu_custom_call.1} parent=39 // pred_fallthru
          _
      $region40: #{tpu_custom_call.1} parent=5 // pred_fallthru
        _
      %p962 = scmp.le.s32.totalorder 2, %s18
      // Predicated region
      $region57: #{tpu_custom_call.1} parent=5 // pred_check
        %p963 = pneg %p962
      $region58: #{tpu_custom_call.1} parent=5 // pred_check_branch
        %965 = sbr.rel (%p963) target = $region60
      $region59: #{tpu_custom_call.1} parent=5 // pred_region
        %s966 = ssub.s32 %s18, 2
        // Predicated region
        $region61: #{tpu_custom_call.1} parent=59 // pred_check
          %p967 = pneg %p157
        $region62: #{tpu_custom_call.1} parent=59 // pred_check_branch
          %969 = sbr.rel (%p967) target = $region64
        $region63: #{tpu_custom_call.1} parent=59 // pred_region
          %s970 = sand.u32 %s142, 1
          %s971 = scalar_lea.sflag [#allocation4], %s970
          %s972 = sand.u32 %s142, 1
          %s973 = smul.addr %s972, 64
          %s974 = scalar_lea.vmem [#allocation8], %s973
          %976 = dma.done %s971, 1024
        $region64: #{tpu_custom_call.1} parent=59 // pred_fallthru
          _
      $region60: #{tpu_custom_call.1} parent=5 // pred_fallthru
        _
    $region6: #{tpu_custom_call.1} parent=1 // loop_footer
      %s22 = sadd.s32 1, %s18
    $region7: #{tpu_custom_call.1} parent=1 // loop_footer_branch
      %17 = sbr.rel target = $region3
    $region8: #{tpu_custom_call.1} parent=1 // loop_exit
      _
    %977 = vsyncpa [#allocation3], 1
    %s978 = scalar_lea.sflag [#allocation3], 1
    %979 = vsyncpa %s978, 1
    %980 = vsyncpa [#allocation6], 1
    %981 = vsyncpa [#allocation4], 1
    %s982 = scalar_lea.sflag [#allocation4], 1
    %983 = vsyncpa %s982, 1

</llo_original>
